<compile_context>
chip_gen: v7x
topology: tpu7x:2x2x1
jax: 0.10.0
libtpu: 0.0.40
codegen_flags: <defaults>
</compile_context>

<pallas_src>
import functools

import jax
import jax.numpy as jnp
from jax.experimental import pallas as pl
from jax.experimental.pallas import tpu as pltpu

GAMMA = 1.5
ALPHA = 0.25

LANES = 128
MAX_ROW_TILE = 4096   # 4096*128*4B = 2 MiB/block; 2 inputs x 2 bufs = 8 MiB


def _round_down(x, m):
    return (x // m) * m


def _elementwise_loss(x, t, gamma, alpha):
    """Exact per-element QFocal loss in f32 (plain-JAX tail path)."""
    x = x.astype(jnp.float32)
    t = t.astype(jnp.float32)
    e = jnp.exp(-jnp.abs(x))
    bce = jnp.maximum(x, 0.0) - x * t + jnp.log1p(e)
    inv = 1.0 / (1.0 + e)
    p = jnp.where(x >= 0.0, inv, e * inv)
    af = t * alpha + (1.0 - t) * (1.0 - alpha)
    d = jnp.abs(t - p)
    mf = d * jnp.sqrt(d) if gamma == 1.5 else d ** gamma
    return bce * af * mf


def _qfocal_kernel(pred_ref, true_ref, o_ref, *, gamma, alpha):
    i = pl.program_id(1)   # reduction step within this split

    @pl.when(i == 0)
    def _():
        o_ref[...] = jnp.zeros_like(o_ref)

    x = pred_ref[...].astype(jnp.float32)
    t = true_ref[...].astype(jnp.float32)

    # Shared transcendental: e = exp(-|x|) feeds both the stable BCE log term
    # and the sigmoid.
    e = jnp.exp(-jnp.abs(x))

    # Numerically-stable BCE-with-logits (reduction='none'):
    #   max(x, 0) - x*t + log1p(exp(-|x|))
    bce = jnp.maximum(x, 0.0) - x * t + jnp.log1p(e)

    # sigmoid(x) from the shared exp:  x>=0 -> 1/(1+e) ;  x<0 -> e/(1+e).
    # Approx EUP reciprocal (no Newton refinement) keeps EUP off the
    # saturating slot.
    inv = pl.reciprocal(1.0 + e, approx=True)
    pred_prob = jnp.where(x >= 0.0, inv, e * inv)

    alpha_factor = t * alpha + (1.0 - t) * (1.0 - alpha)
    d = jnp.abs(t - pred_prob)
    if gamma == 1.5:
        modulating_factor = d * jnp.sqrt(d)      # d**1.5 without pow (exp+log)
    else:
        modulating_factor = d ** gamma
    loss = bce * alpha_factor * modulating_factor

    # Fold rows into a resident (8, LANES) vector accumulator with VPU adds
    # (major-axis reduction); the single cross-lane reduce happens once in the
    # wrapper.  No padding mask: every block the grid visits is fully valid.
    row_tile = loss.shape[0]
    partial = jnp.sum(loss.reshape(row_tile // 8, 8, LANES), axis=0)
    o_ref[...] += partial.reshape(1, 8, LANES)


def qfocal_loss(pred, true, gamma=GAMMA, alpha=ALPHA, reduction="mean"):
    assert pred.shape == true.shape
    total = pred.size
    assert total > 0

    # Keep inputs in their native dtype (bf16 stays bf16 -> half the HBM
    # traffic); the kernel upcasts to f32 for the math.
    flat_p = pred.reshape(-1)
    flat_t = true.reshape(-1)

    rows = total // LANES                       # number of full 128-lane rows
    itemsize = min(4, max(jnp.dtype(pred.dtype).itemsize,
                          jnp.dtype(true.dtype).itemsize))
    sub = 8 * (4 // itemsize)                   # packed sublane multiple: 8/16/32

    if rows >= sub:
        steps = -(-rows // MAX_ROW_TILE)                    # ceil
        row_tile = _round_down(rows // steps, sub)          # sublane-aligned
        bulk_rows = steps * row_tile
    else:
        steps = 0
        row_tile = 0
        bulk_rows = 0
    bulk = bulk_rows * LANES

    total_sum = jnp.zeros((), jnp.float32)

    if steps > 0:
        if total == rows * LANES:
            # Free bitcast reshape; the grid only touches the first bulk_rows
            # rows, so no padding / masking / extra HBM copy is needed.
            pred2d = flat_p.reshape(rows, LANES)
            true2d = flat_t.reshape(rows, LANES)
        else:
            # total not 128-aligned: a prefix-slice copy is unavoidable to get
            # a 2-D lane-dense view for the kernel.
            pred2d = flat_p[:bulk].reshape(bulk_rows, LANES)
            true2d = flat_t[:bulk].reshape(bulk_rows, LANES)

        # Leading split axis: only used when whole blocks divide evenly, so
        # single-TC v5e/v6e never pay dead work; on v7x "parallel" lets the two
        # TensorCores each stream half the blocks.
        num_splits = 2 if (steps >= 2 and steps % 2 == 0) else 1
        spp = steps // num_splits               # steps per split

        kernel = functools.partial(_qfocal_kernel, gamma=gamma, alpha=alpha)
        partials = pl.pallas_call(
            kernel,
            out_shape=jax.ShapeDtypeStruct((num_splits, 8, LANES), jnp.float32),
            grid_spec=pltpu.PrefetchScalarGridSpec(
                num_scalar_prefetch=0,
                grid=(num_splits, spp),
                in_specs=[
                    pl.BlockSpec((row_tile, LANES), lambda c, i: (c * spp + i, 0)),
                    pl.BlockSpec((row_tile, LANES), lambda c, i: (c * spp + i, 0)),
                ],
                out_specs=pl.BlockSpec((1, 8, LANES), lambda c, i: (c, 0, 0)),
            ),
            compiler_params=pltpu.CompilerParams(
                # TODO(synk): verify on v7x (xprof) that "parallel" actually
                # shards axis 0 across both TensorCores; if not, switch to
                # pltpu.CORE_PARALLEL for that axis.
                dimension_semantics=("parallel", "arbitrary"),
            ),
        )(pred2d, true2d)
        total_sum = jnp.sum(partials)           # single cross-lane reduce, in XLA

    if bulk < total:
        # <1-block ragged tail (leftover rows + sub-128 remainder): plain JAX.
        tail = _elementwise_loss(flat_p[bulk:], flat_t[bulk:], gamma, alpha)
        total_sum = total_sum + jnp.sum(tail)

    if reduction == "mean":
        return total_sum / jnp.float32(total)
    elif reduction == "sum":
        return total_sum
    else:
        # TODO(synk): reduction='none' (full elementwise map) would need a
        # second kernel variant that writes the per-element loss back out.
        raise NotImplementedError("reduction='none' not implemented")


def qfocal_loss_ref(pred, true, gamma=GAMMA, alpha=ALPHA):
    x = pred.astype(jnp.float32)
    t = true.astype(jnp.float32)
    bce = jnp.maximum(x, 0.0) - x * t + jnp.log1p(jnp.exp(-jnp.abs(x)))
    p = jax.nn.sigmoid(x)
    af = t * alpha + (1.0 - t) * (1.0 - alpha)
    mf = jnp.abs(t - p) ** gamma
    return jnp.mean(bce * af * mf)


if __name__ == "__main__":
    key = jax.random.PRNGKey(0)
    k1, k2 = jax.random.split(key)
    # NCHW: batch=2, channels=4, spatial=16x16 -> 2048 elements.
    shape = (2, 4, 16, 16)
    pred = jax.random.normal(k1, shape, dtype=jnp.float32)
    true = (jax.random.uniform(k2, shape) > 0.5).astype(jnp.float32)

    out = qfocal_loss(pred, true)
    out = jax.block_until_ready(out)

    ref = qfocal_loss_ref(pred, true)
    # Tolerance loosened slightly for pl.reciprocal(approx=True) in the kernel.
    assert jnp.allclose(out, ref, rtol=5e-3, atol=5e-4), (out, ref)
    print("KERNEL_OK")
</pallas_src>

<mosaic_0001>
module attributes {stable_mosaic.version = 11 : i64} {
  func.func @_qfocal_kernel(%arg0: i32, %arg1: i32, %arg2: memref<16x128xf32, #tpu.memory_space<vmem>>, %arg3: memref<16x128xf32, #tpu.memory_space<vmem>>, %arg4: memref<1x8x128xf32, #tpu.memory_space<vmem>>) attributes {dimension_semantics = [#tpu.dimension_semantics<parallel>, #tpu.dimension_semantics<arbitrary>], iteration_bounds = array<i64: 1, 1>, scalar_prefetch = 0 : i64, scratch_operands = 0 : i64, tpu.core_type = #tpu.core_type<tc>, window_params = [{transform_indices = @transform_0, window_bounds = array<i64: 16, 128>}, {transform_indices = @transform_1, window_bounds = array<i64: 16, 128>}, {transform_indices = @transform_2, window_bounds = array<i64: 1, 8, 128>}]} {
    %c0_i32 = arith.constant 0 : i32
    %0 = arith.cmpi eq, %arg1, %c0_i32 : i32
    %1 = arith.extui %0 : i1 to i32
    %c0_i32_0 = arith.constant 0 : i32
    %2 = arith.cmpi ne, %1, %c0_i32_0 : i32
    scf.if %2 {
      %cst_17 = arith.constant 0.000000e+00 : f32
      %41 = vector.broadcast %cst_17 : f32 to vector<1x8x128xf32>
      %c0_18 = arith.constant 0 : index
      %c0_19 = arith.constant 0 : index
      %c0_20 = arith.constant 0 : index
      %42 = vector.load %arg4[%c0_18, %c0_19, %c0_20] : memref<1x8x128xf32, #tpu.memory_space<vmem>>, vector<1x8x128xf32>
      tpu.vector_store %arg4[%c0_18, %c0_19, %c0_20], %41 {strides = array<i32>} : memref<1x8x128xf32, #tpu.memory_space<vmem>>, vector<1x8x128xf32>,
    } else {
    }
    %c0 = arith.constant 0 : index
    %c0_1 = arith.constant 0 : index
    %3 = vector.load %arg2[%c0, %c0_1] : memref<16x128xf32, #tpu.memory_space<vmem>>, vector<16x128xf32>
    %c0_2 = arith.constant 0 : index
    %c0_3 = arith.constant 0 : index
    %4 = vector.load %arg3[%c0_2, %c0_3] : memref<16x128xf32, #tpu.memory_space<vmem>>, vector<16x128xf32>
    %5 = math.absf %3 : vector<16x128xf32>
    %cst = arith.constant 0.000000e+00 : f32
    %6 = vector.broadcast %cst : f32 to vector<16x128xf32>
    %7 = arith.subf %6, %5 : vector<16x128xf32>
    %8 = math.exp %7 : vector<16x128xf32>
    %cst_4 = arith.constant 0.000000e+00 : f32
    %9 = vector.broadcast %cst_4 : f32 to vector<16x128xf32>
    %10 = arith.maximumf %3, %9 : vector<16x128xf32>
    %11 = arith.mulf %3, %4 : vector<16x128xf32>
    %12 = arith.subf %10, %11 : vector<16x128xf32>
    %13 = math.log1p %8 : vector<16x128xf32>
    %14 = arith.addf %12, %13 : vector<16x128xf32>
    %cst_5 = arith.constant 1.000000e+00 : f32
    %15 = vector.broadcast %cst_5 : f32 to vector<16x128xf32>
    %16 = arith.addf %15, %8 : vector<16x128xf32>
    %17 = tpu.reciprocal %16 {approx = true} : vector<16x128xf32> -> vector<16x128xf32>
    %cst_6 = arith.constant 0.000000e+00 : f32
    %18 = vector.broadcast %cst_6 : f32 to vector<16x128xf32>
    %19 = arith.cmpf oge, %3, %18 : vector<16x128xf32>
    %20 = arith.mulf %8, %17 : vector<16x128xf32>
    %21 = arith.select %19, %17, %20 : vector<16x128xi1>, vector<16x128xf32>
    %cst_7 = arith.constant 2.500000e-01 : f32
    %22 = vector.broadcast %cst_7 : f32 to vector<16x128xf32>
    %23 = arith.mulf %4, %22 : vector<16x128xf32>
    %cst_8 = arith.constant 1.000000e+00 : f32
    %24 = vector.broadcast %cst_8 : f32 to vector<16x128xf32>
    %25 = arith.subf %24, %4 : vector<16x128xf32>
    %cst_9 = arith.constant 7.500000e-01 : f32
    %26 = vector.broadcast %cst_9 : f32 to vector<16x128xf32>
    %27 = arith.mulf %25, %26 : vector<16x128xf32>
    %28 = arith.addf %23, %27 : vector<16x128xf32>
    %29 = arith.subf %4, %21 : vector<16x128xf32>
    %30 = math.absf %29 : vector<16x128xf32>
    %31 = math.sqrt %30 : vector<16x128xf32>
    %32 = arith.mulf %30, %31 : vector<16x128xf32>
    %33 = arith.mulf %14, %28 : vector<16x128xf32>
    %34 = arith.mulf %33, %32 : vector<16x128xf32>
    %35 = vector.shape_cast %34 : vector<16x128xf32> to vector<2x8x128xf32>
    %cst_10 = arith.constant dense<0.000000e+00> : vector<8x128xf32>
    %36 = vector.multi_reduction <add>, %35, %cst_10 [0] : vector<2x8x128xf32> to vector<8x128xf32>
    %c0_11 = arith.constant 0 : index
    %c0_12 = arith.constant 0 : index
    %c0_13 = arith.constant 0 : index
    %37 = vector.load %arg4[%c0_11, %c0_12, %c0_13] : memref<1x8x128xf32, #tpu.memory_space<vmem>>, vector<1x8x128xf32>
    %38 = vector.shape_cast %36 : vector<8x128xf32> to vector<1x8x128xf32>
    %39 = arith.addf %37, %38 : vector<1x8x128xf32>
    %c0_14 = arith.constant 0 : index
    %c0_15 = arith.constant 0 : index
    %c0_16 = arith.constant 0 : index
    %40 = vector.load %arg4[%c0_14, %c0_15, %c0_16] : memref<1x8x128xf32, #tpu.memory_space<vmem>>, vector<1x8x128xf32>
    tpu.vector_store %arg4[%c0_14, %c0_15, %c0_16], %39 {strides = array<i32>} : memref<1x8x128xf32, #tpu.memory_space<vmem>>, vector<1x8x128xf32>,
    return
  }
  func.func @transform_0(%arg0: i32, %arg1: i32) -> (i32, i32) {
    %c1_i32 = arith.constant 1 : i32
    %0 = arith.muli %arg0, %c1_i32 : i32
    %1 = arith.addi %0, %arg1 : i32
    %c0_i32 = arith.constant 0 : i32
    %c0_i32_0 = arith.constant 0 : i32
    return %1, %c0_i32 : i32, i32
  }
  func.func @transform_1(%arg0: i32, %arg1: i32) -> (i32, i32) {
    %c1_i32 = arith.constant 1 : i32
    %0 = arith.muli %arg0, %c1_i32 : i32
    %1 = arith.addi %0, %arg1 : i32
    %c0_i32 = arith.constant 0 : i32
    %c0_i32_0 = arith.constant 0 : i32
    return %1, %c0_i32 : i32, i32
  }
  func.func @transform_2(%arg0: i32, %arg1: i32) -> (i32, i32, i32) {
    %c0_i32 = arith.constant 0 : i32
    %c0_i32_0 = arith.constant 0 : i32
    %c0_i32_1 = arith.constant 0 : i32
    return %arg0, %c0_i32, %c0_i32_0 : i32, i32, i32
  }
}

</mosaic_0001>

<llo_original>
// kernel: tpu_custom_call.1
$region0: #{tpu_custom_call.1}
  #allocation0 [shape = 'u32[]', space=smem, size = 0x4, offset = 0x4, fixed_abs, tag = 'smem constant byte address 0x4 - core index']
  #allocation1 [shape = 'u32[144,128]{1,0:T(1,128)}', space=vmem, size = 0x12000, scoped, tag = 'internal scratch']
  %s0 = inlined_call_operand.hbm [shape: f32[16,128], index: 0, kind: input, shape index: {}]
  %s1 = inlined_call_operand.hbm [shape: f32[16,128], index: 1, kind: input, shape index: {}]
  %s2 = inlined_call_operand.hbm [shape: f32[1,8,128], index: 2, kind: output, shape index: {}]
  %s3 = sld [smem:[#allocation0]]
  $region30: #{tpu_custom_call.1} parent=0
    _
  %s5 = ssub.s32 1, %s3
  %s6 = scalar_select 0, %s5, %s3
  $region1: #{tpu_custom_call.1} parent=0
    #allocation2 [shape = 'u8[8192]{0}', space=vmem, size = 0x2000, scoped, tag = 'input window, operand 0, single buffered']
    #allocation3 [shape = 's32[1]{0}', space=sflag, size = 0x4, scoped, tag = 'scoped memory for tpu_custom_call.1']
    #allocation4 [shape = 's32[1]{0}', space=sflag, size = 0x4, scoped, tag = 'scoped memory for tpu_custom_call.1']
    #allocation5 [shape = 'u8[8192]{0}', space=vmem, size = 0x2000, scoped, tag = 'input window, operand 1, single buffered']
    #allocation6 [shape = 's32[1]{0}', space=sflag, size = 0x4, scoped, tag = 'scoped memory for tpu_custom_call.1']
    #allocation7 [shape = 'u8[4096]{0}', space=vmem, size = 0x1000, scoped, tag = 'output window, operand 0, single buffered']
    %7 = vsyncpa [#allocation3], 0
    %8 = vsyncpa [#allocation6], 0
    %9 = vsyncpa [#allocation4], 0
    // Predicated region
    $region2: #{tpu_custom_call.1} parent=1 // pred_check
      _
    $region3: #{tpu_custom_call.1} parent=1 // pred_check_branch
      %11 = sbr.rel (0) target = $region5
    $region4: #{tpu_custom_call.1} parent=1 // pred_region
      %s12 = sadd.s32 0, 0
      %s13 = smul.u32 2, %s12
      %s15 = ssub.s32 256, 256
      %16 = vsyncadd [#allocation3], %s15
      %s17 = smul.addr %s13, 128
      %s18 = scalar_lea.hbm %s0, %s17
      %s19 = sshll.u32 [#allocation2], 4
      %s20 = int_to_ptr.vmem [resolvable:$true] %s19
      %25 = dma.hbm_to_vmem [thread:$0]  %s18, 256, %s20, [#allocation3], 128, 128, 8
    $region5: #{tpu_custom_call.1} parent=1 // pred_fallthru
      _
    // Predicated region
    $region6: #{tpu_custom_call.1} parent=1 // pred_check
      _
    $region7: #{tpu_custom_call.1} parent=1 // pred_check_branch
      %27 = sbr.rel (0) target = $region9
    $region8: #{tpu_custom_call.1} parent=1 // pred_region
      %s28 = sadd.s32 0, 0
      %s29 = smul.u32 2, %s28
      %s31 = ssub.s32 256, 256
      %32 = vsyncadd [#allocation6], %s31
      %s33 = smul.addr %s29, 128
      %s34 = scalar_lea.hbm %s1, %s33
      %s35 = sshll.u32 [#allocation5], 4
      %s36 = int_to_ptr.vmem [resolvable:$true] %s35
      %41 = dma.hbm_to_vmem [thread:$0]  %s34, 256, %s36, [#allocation6], 128, 128, 8
    $region9: #{tpu_custom_call.1} parent=1 // pred_fallthru
      _
    // Predicated region
    $region10: #{tpu_custom_call.1} parent=1 // pred_check
      _
    $region11: #{tpu_custom_call.1} parent=1 // pred_check_branch
      %43 = sbr.rel (0) target = $region13
    $region12: #{tpu_custom_call.1} parent=1 // pred_region
      %44 = dma.done [#allocation3], 256
    $region13: #{tpu_custom_call.1} parent=1 // pred_fallthru
      _
    // Predicated region
    $region14: #{tpu_custom_call.1} parent=1 // pred_check
      _
    $region15: #{tpu_custom_call.1} parent=1 // pred_check_branch
      %46 = sbr.rel (0) target = $region17
    $region16: #{tpu_custom_call.1} parent=1 // pred_region
      %47 = dma.done [#allocation6], 256
    $region17: #{tpu_custom_call.1} parent=1 // pred_fallthru
      _
    %s48 = sadd.s32 0, 0
    %s49 = smul.u32 2, %s48
    %s50 = sadd.s32 0, 0
    %s51 = smul.u32 2, %s50
    %p52 = scmp.eq.s32.totalorder 0, 0
    // Predicated region
    $region18: #{tpu_custom_call.1} parent=1 // pred_check
      %p53 = pneg %p52
    $region19: #{tpu_custom_call.1} parent=1 // pred_check_branch
      %55 = sbr.rel (%p53) target = $region21
    $region20: #{tpu_custom_call.1} parent=1 // pred_region
      %56 = vst [vmem:[#allocation7] sm:$0xff] 0.0
    $region21: #{tpu_custom_call.1} parent=1 // pred_fallthru
      _
    %v57 = vld [vmem:[#allocation2] sm:$0xff]
    %v58 = vld [vmem:[#allocation2 + $0x8] sm:$0xff]
    %v59 = vld [vmem:[#allocation5] sm:$0xff]
    %v60 = vld [vmem:[#allocation5 + $0x8] sm:$0xff]
    %v61 = vand.u32 2147483647, %v57
    %v62 = vand.u32 2147483647, %v58
    %v63 = vsub.f32 0.0, %v61
    %v64 = vsub.f32 0.0, %v62
    %v65 = vmul.f32 %v63, 1.442695
    %v66 = vpow.pop %v65
    %v67 = vmul.f32 %v64, 1.442695
    %v68 = vpow.pop %v67
    %v69 = vmax.f32 %v57, 0.0
    %v70 = vmax.f32 %v58, 0.0
    %v71 = vmul.f32 %v57, %v59
    %v72 = vmul.f32 %v58, %v60
    %v73 = vsub.f32 %v69, %v71
    %v74 = vsub.f32 %v70, %v72
    %v75 = vadd.f32 %v66, 1.0
    %v76 = vlog2.pop %v75
    %v77 = vmul.f32 %v76, 0.6931472
    %v78 = vmul.f32 -0.5, %v66
    %v79 = vadd.f32 %v78, 1.0
    %v80 = vmul.f32 %v79, %v66
    %v81 = vand.u32 2147483647, %v66
    %vm82 = vcmp.lt.f32.partialorder %v81, 0.0004427343
    %v83 = vsel %vm82, %v80, %v77
    %v84 = vadd.f32 %v68, 1.0
    %v85 = vlog2.pop %v84
    %v86 = vmul.f32 %v85, 0.6931472
    %v87 = vmul.f32 -0.5, %v68
    %v88 = vadd.f32 %v87, 1.0
    %v89 = vmul.f32 %v88, %v68
    %v90 = vand.u32 2147483647, %v68
    %vm91 = vcmp.lt.f32.partialorder %v90, 0.0004427343
    %v92 = vsel %vm91, %v89, %v86
    %v93 = vadd.f32 %v73, %v83
    %v94 = vadd.f32 %v74, %v92
    %v95 = vadd.f32 %v66, 1.0
    %v96 = vadd.f32 %v68, 1.0
    %v97 = vrcp.pop %v95
    %v98 = vrcp.pop %v96
    %vm99 = vcmp.ge.f32.partialorder %v57, 0.0
    %vm100 = vcmp.ge.f32.partialorder %v58, 0.0
    %v101 = vmul.f32 %v66, %v97
    %v102 = vmul.f32 %v68, %v98
    %v103 = vsel %vm99, %v97, %v101
    %v104 = vsel %vm100, %v98, %v102
    %v105 = vmul.f32 %v59, 0.25
    %v106 = vmul.f32 %v60, 0.25
    %v107 = vsub.f32 1.0, %v59
    %v108 = vsub.f32 1.0, %v60
    %v109 = vmul.f32 %v107, 0.75
    %v110 = vmul.f32 %v108, 0.75
    %v111 = vadd.f32 %v105, %v109
    %v112 = vadd.f32 %v106, %v110
    %v113 = vsub.f32 %v59, %v103
    %v114 = vsub.f32 %v60, %v104
    %v115 = vand.u32 2147483647, %v113
    %v116 = vand.u32 2147483647, %v114
    %v117 = vrsqrt.pop %v115
    %v118 = vmul.f32 %v115, %v117
    %vm119 = vcmp.eq.f32.partialorder %v115, inf
    %v120 = vsel %vm119, %v115, %v118
    %vm121 = vcmp.eq.f32.partialorder %v115, 0.0
    %v122 = vand.u32 %v115, 2147483648
    %v123 = vsel %vm121, %v122, %v120
    %v124 = vrsqrt.pop %v116
    %v125 = vmul.f32 %v116, %v124
    %vm126 = vcmp.eq.f32.partialorder %v116, inf
    %v127 = vsel %vm126, %v116, %v125
    %vm128 = vcmp.eq.f32.partialorder %v116, 0.0
    %v129 = vand.u32 %v116, 2147483648
    %v130 = vsel %vm128, %v129, %v127
    %v131 = vmul.f32 %v115, %v123
    %v132 = vmul.f32 %v116, %v130
    %v133 = vmul.f32 %v93, %v111
    %v134 = vmul.f32 %v94, %v112
    %v135 = vmul.f32 %v133, %v131
    %v136 = vmul.f32 %v134, %v132
    %v137 = vadd.f32 %v135, %v136
    %v138 = vld [vmem:[#allocation7] sm:$0xff]
    %v139 = vadd.f32 %v138, %v137
    %140 = vst [vmem:[#allocation7] sm:$0xff] %v139
    // Predicated region
    $region22: #{tpu_custom_call.1} parent=1 // pred_check
      _
    $region23: #{tpu_custom_call.1} parent=1 // pred_check_branch
      %142 = sbr.rel (0) target = $region25
    $region24: #{tpu_custom_call.1} parent=1 // pred_region
      %s144 = ssub.s32 128, 128
      %145 = vsyncadd [#allocation4], %s144
      %s147 = sshll.u32 [#allocation7], 4
      %s148 = int_to_ptr.vmem [resolvable:$true] %s147
      %150 = dma.vmem_to_hbm [thread:$0]  %s148, 128, %s2, [#allocation4]
    $region25: #{tpu_custom_call.1} parent=1 // pred_fallthru
      _
    // Predicated region
    $region26: #{tpu_custom_call.1} parent=1 // pred_check
      _
    $region27: #{tpu_custom_call.1} parent=1 // pred_check_branch
      %152 = sbr.rel (0) target = $region29
    $region28: #{tpu_custom_call.1} parent=1 // pred_region
      %153 = dma.done [#allocation4], 128
    $region29: #{tpu_custom_call.1} parent=1 // pred_fallthru
      _
    %154 = vsyncpa [#allocation3], 1
    %155 = vsyncpa [#allocation6], 1
    %156 = vsyncpa [#allocation4], 1

</llo_original>
